<compile_context>
chip_gen: v7x
topology: tpu7x:2x2x1
jax: 0.10.0
libtpu: 0.0.40
codegen_flags: <defaults>
</compile_context>

<pallas_src>
import functools

import jax
import jax.numpy as jnp
import numpy as np
from jax.experimental import pallas as pl
from jax.experimental.pallas import tpu as pltpu

GAMMA = 1.0
EPS = 1e-6


# ----------------------------------------------------------------------------- kernel helpers
def _l2_normalize_cols(x, eps):
    """Per-column L2 normalization via EUP rsqrt (approximates x / (||x||_2 + eps))."""
    ss = jnp.sum(x * x, axis=0, keepdims=True)                        # (1, N) sublane reduce
    inv = jax.lax.rsqrt(ss + eps * eps)                               # single EUP op
    return x * inv


def _pairing_loss(xn, sel, sign, valid, eps):
    """Lane-dense tuple pairing + exponential loss over the full (D, N) block.

    sel   : (N, N) one-hot selector; column j selects the query column of j's tuple.
    sign  : (1, N) = +gamma for positives, -gamma for negatives (value for query cols
            is irrelevant — they are masked by `valid`).
    valid : (1, N) = 1.0 for non-query columns, 0.0 for query columns.
    """
    xq = jnp.dot(xn, sel, preferred_element_type=jnp.float32)         # (D, N) query broadcast (MXU)
    dif = (xq - xn) + eps                                             # matches reference x1 - x2 + eps
    dsq = jnp.sum(dif * dif, axis=0, keepdims=True)                   # (1, N) single sublane reduce
    d = jnp.sqrt(dsq)
    y = valid * jnp.exp(sign * d)                                     # ONE exp per column (EUP)
    return jnp.sum(y)                                                 # single cross-lane reduce


# ----------------------------------------------------------------------------- fused kernels
def _exp_loss_kernel(x_ref, sel_ref, sign_ref, valid_ref, o_ref, *, eps):
    """No-whitening variant: normalize -> lane-dense pairing -> scalar loss."""
    xn = _l2_normalize_cols(x_ref[...].astype(jnp.float32), eps)
    o_ref[0, 0] = _pairing_loss(xn, sel_ref[...], sign_ref[...], valid_ref[...], eps)


def _exp_loss_whiten_kernel(x_ref, p_ref, m_ref, sel_ref, sign_ref, valid_ref, o_ref, *, eps):
    """Whitening variant: P @ (x - m) on the MXU (native dtype in, f32 accumulate)."""
    xw = jnp.dot(p_ref[...], x_ref[...] - m_ref[...],
                 preferred_element_type=jnp.float32)                  # (D, N) f32
    xn = _l2_normalize_cols(xw, eps)
    o_ref[0, 0] = _pairing_loss(xn, sel_ref[...], sign_ref[...], valid_ref[...], eps)


# ----------------------------------------------------------------------------- wrapper
def exponential_loss(x, label, Lw=None, gamma=GAMMA, eps=EPS):
    """Forward pass of ExponentialLoss.  x: (D, N), label: (N,) in {-1, 1, 0}."""
    D, N = x.shape
    lbl_np = np.asarray(label)
    q_pos = np.nonzero(lbl_np == -1)[0]
    nq = int(q_pos.size)                                              # number of tuples (queries)
    assert nq > 0 and N % nq == 0, "uniform contiguous tuples assumed"
    S = N // nq                                                       # images per tuple

    # Host-precomputed, label-driven masks (no per-tuple compares / double exp in-kernel).
    sel_np = np.zeros((N, N), np.float32)
    for t in range(nq):
        lo, hi = t * S, (t + 1) * S
        q_in = q_pos[(q_pos >= lo) & (q_pos < hi)]
        assert q_in.size == 1, "exactly one query (-1) per tuple assumed"
        sel_np[int(q_in[0]), lo:hi] = 1.0                             # query column -> whole tuple
    sign_np = np.where(lbl_np == 1, gamma, -gamma).astype(np.float32)[None, :]
    valid_np = (lbl_np != -1).astype(np.float32)[None, :]

    sel = jnp.asarray(sel_np)
    sign = jnp.asarray(sign_np)
    valid = jnp.asarray(valid_np)

    out_shape = jax.ShapeDtypeStruct((1, 1), jnp.float32)
    out_spec = pl.BlockSpec(memory_space=pltpu.MemorySpace.SMEM)      # scalar -> SMEM
    vmem = pl.BlockSpec(memory_space=pltpu.MemorySpace.VMEM)

    if Lw is None:
        # Skip the whitening matmul entirely (no identity matmul, no (D,D) DMA).
        kern = functools.partial(_exp_loss_kernel, eps=eps)
        out = pl.pallas_call(
            kern,
            in_specs=[vmem, vmem, vmem, vmem],
            out_specs=out_spec,
            out_shape=out_shape,
        )(x, sel, sign, valid)
    else:
        P = Lw["P"].astype(x.dtype)                                   # keep native dtype into the MXU
        m = Lw["m"].astype(x.dtype)
        kern = functools.partial(_exp_loss_whiten_kernel, eps=eps)
        out = pl.pallas_call(
            kern,
            in_specs=[vmem, vmem, vmem, vmem, vmem, vmem],
            out_specs=out_spec,
            out_shape=out_shape,
        )(x, P, m, sel, sign, valid)
    return out[0, 0]


# ----------------------------------------------------------------------------- reference
def _reference(x, label, Lw=None, gamma=GAMMA, eps=EPS):
    x = x.astype(jnp.float32)
    if Lw is not None:
        x = Lw["P"].astype(jnp.float32) @ (x - Lw["m"].astype(jnp.float32))
    xn = x / (jnp.sqrt(jnp.sum(x * x, axis=0, keepdims=True)) + eps)
    lbl_np = np.asarray(label)
    N = x.shape[1]
    q_pos = np.nonzero(lbl_np == -1)[0]
    nq = int(q_pos.size)
    S = N // nq
    q_of = np.zeros((N,), np.int32)                                   # query column per sample column
    for t in range(nq):
        lo, hi = t * S, (t + 1) * S
        q_of[lo:hi] = int(q_pos[(q_pos >= lo) & (q_pos < hi)][0])
    keep = np.nonzero(lbl_np != -1)[0]
    x1 = xn[:, q_of[keep]]                                            # repeated queries
    x2 = xn[:, keep]                                                  # non-query columns
    lbl = jnp.asarray(lbl_np[keep], jnp.float32)
    Dd = jnp.sqrt(jnp.sum((x1 - x2 + eps) ** 2, axis=0))
    y = lbl * jnp.exp(gamma * Dd) + (1.0 - lbl) * jnp.exp(-gamma * Dd)
    return jnp.sum(y)


# ----------------------------------------------------------------------------- main
if __name__ == "__main__":
    key = jax.random.PRNGKey(0)
    k_x, k_p, k_m = jax.random.split(key, 3)

    Dfeat = 32          # descriptor dimension
    nq = 2              # number of tuples (queries)
    S = 7               # images per tuple: 1 query + 1 positive + 5 negatives
    N = nq * S          # total descriptors

    x = jax.random.normal(k_x, (Dfeat, N), dtype=jnp.float32)
    x = x / jnp.linalg.norm(x, axis=0, keepdims=True)

    # label layout per tuple: [-1 (query), 1 (positive), 0 x 5 (negatives)]
    label = jnp.asarray(np.tile(np.array([-1, 1, 0, 0, 0, 0, 0], np.int32), nq))

    # deterministic learned-whitening params Lw (synthetic, not a checkpoint)
    Lw = {
        "P": jnp.eye(Dfeat, dtype=jnp.float32)
        + 0.01 * jax.random.normal(k_p, (Dfeat, Dfeat), dtype=jnp.float32),
        "m": 0.05 * jax.random.normal(k_m, (Dfeat, 1), dtype=jnp.float32),
    }

    # Whitened path (MXU matmul fused into the loss kernel).
    loss_w = jax.block_until_ready(exponential_loss(x, label, Lw=Lw, gamma=GAMMA, eps=EPS))
    ref_w = jax.block_until_ready(_reference(x, label, Lw=Lw, gamma=GAMMA, eps=EPS))
    assert jnp.allclose(loss_w, ref_w, rtol=1e-4, atol=1e-4), (loss_w, ref_w)

    # No-whitening path (matmul skipped at trace time — no identity matmul).
    loss_n = jax.block_until_ready(exponential_loss(x, label, Lw=None, gamma=GAMMA, eps=EPS))
    ref_n = jax.block_until_ready(_reference(x, label, Lw=None, gamma=GAMMA, eps=EPS))
    assert jnp.allclose(loss_n, ref_n, rtol=1e-4, atol=1e-4), (loss_n, ref_n)

    print("KERNEL_OK")
</pallas_src>

<mosaic_0001>
module attributes {stable_mosaic.version = 11 : i64} {
  func.func @_exp_loss_whiten_kernel(%arg0: memref<32x14xf32, #tpu.memory_space<vmem>>, %arg1: memref<32x32xf32, #tpu.memory_space<vmem>>, %arg2: memref<32x1xf32, #tpu.memory_space<vmem>>, %arg3: memref<14x14xf32, #tpu.memory_space<vmem>>, %arg4: memref<1x14xf32, #tpu.memory_space<vmem>>, %arg5: memref<1x14xf32, #tpu.memory_space<vmem>>, %arg6: memref<1x1xf32, #tpu.memory_space<smem>>) attributes {dimension_semantics = [], scalar_prefetch = 0 : i64, scratch_operands = 0 : i64, tpu.core_type = #tpu.core_type<tc>} {
    %c0 = arith.constant 0 : index
    %c0_0 = arith.constant 0 : index
    %0 = vector.load %arg1[%c0, %c0_0] : memref<32x32xf32, #tpu.memory_space<vmem>>, vector<32x32xf32>
    %c0_1 = arith.constant 0 : index
    %c0_2 = arith.constant 0 : index
    %1 = vector.load %arg0[%c0_1, %c0_2] : memref<32x14xf32, #tpu.memory_space<vmem>>, vector<32x14xf32>
    %c0_3 = arith.constant 0 : index
    %c0_4 = arith.constant 0 : index
    %2 = vector.load %arg2[%c0_3, %c0_4] : memref<32x1xf32, #tpu.memory_space<vmem>>, vector<32x1xf32>
    %3 = vector.broadcast %2 : vector<32x1xf32> to vector<32x14xf32>
    %4 = arith.subf %1, %3 : vector<32x14xf32>
    %cst = arith.constant dense<0.000000e+00> : vector<32x14xf32>
    %5 = tpu.matmul %0, %4, %cst {dimension_numbers = #tpu.dot_dimension_numbers<[1], [0], [0], [1], [0, 0, 1, 1], [], []>} : vector<32x32xf32>, vector<32x14xf32>, vector<32x14xf32> -> vector<32x14xf32>
    %6 = arith.mulf %5, %5 : vector<32x14xf32>
    %cst_5 = arith.constant dense<0.000000e+00> : vector<14xf32>
    %7 = vector.multi_reduction <add>, %6, %cst_5 [0] : vector<32x14xf32> to vector<14xf32>
    %8 = vector.shape_cast %7 : vector<14xf32> to vector<1x14xf32>
    %cst_6 = arith.constant 9.99999996E-13 : f32
    %9 = vector.broadcast %cst_6 : f32 to vector<1x14xf32>
    %10 = arith.addf %8, %9 : vector<1x14xf32>
    %11 = math.rsqrt %10 : vector<1x14xf32>
    %12 = vector.broadcast %11 : vector<1x14xf32> to vector<32x14xf32>
    %13 = arith.mulf %5, %12 : vector<32x14xf32>
    %c0_7 = arith.constant 0 : index
    %c0_8 = arith.constant 0 : index
    %14 = vector.load %arg3[%c0_7, %c0_8] : memref<14x14xf32, #tpu.memory_space<vmem>>, vector<14x14xf32>
    %c0_9 = arith.constant 0 : index
    %c0_10 = arith.constant 0 : index
    %15 = vector.load %arg4[%c0_9, %c0_10] : memref<1x14xf32, #tpu.memory_space<vmem>>, vector<1x14xf32>
    %c0_11 = arith.constant 0 : index
    %c0_12 = arith.constant 0 : index
    %16 = vector.load %arg5[%c0_11, %c0_12] : memref<1x14xf32, #tpu.memory_space<vmem>>, vector<1x14xf32>
    %cst_13 = arith.constant dense<0.000000e+00> : vector<32x14xf32>
    %17 = tpu.matmul %13, %14, %cst_13 {dimension_numbers = #tpu.dot_dimension_numbers<[1], [0], [0], [1], [0, 0, 1, 1], [], []>} : vector<32x14xf32>, vector<14x14xf32>, vector<32x14xf32> -> vector<32x14xf32>
    %18 = arith.subf %17, %13 : vector<32x14xf32>
    %cst_14 = arith.constant 9.99999997E-7 : f32
    %19 = vector.broadcast %cst_14 : f32 to vector<32x14xf32>
    %20 = arith.addf %18, %19 : vector<32x14xf32>
    %21 = arith.mulf %20, %20 : vector<32x14xf32>
    %cst_15 = arith.constant dense<0.000000e+00> : vector<14xf32>
    %22 = vector.multi_reduction <add>, %21, %cst_15 [0] : vector<32x14xf32> to vector<14xf32>
    %23 = vector.shape_cast %22 : vector<14xf32> to vector<1x14xf32>
    %24 = math.sqrt %23 : vector<1x14xf32>
    %25 = arith.mulf %15, %24 : vector<1x14xf32>
    %26 = math.exp %25 : vector<1x14xf32>
    %27 = arith.mulf %16, %26 : vector<1x14xf32>
    %28 = vector.shape_cast %27 : vector<1x14xf32> to vector<1x1x14xf32>
    %cst_16 = arith.constant dense<0.000000e+00> : vector<1xf32>
    %29 = vector.multi_reduction <add>, %28, %cst_16 [1, 2] : vector<1x1x14xf32> to vector<1xf32>
    %30 = vector.shape_cast %29 : vector<1xf32> to vector<1x1x1xf32>
    %31 = vector.extract %30[0, 0, 0] : f32 from vector<1x1x1xf32>
    %c0_17 = arith.constant 0 : index
    %c0_18 = arith.constant 0 : index
    %32 = memref.load %arg6[%c0_17, %c0_18] : memref<1x1xf32, #tpu.memory_space<smem>>
    memref.store %31, %arg6[%c0_17, %c0_18] : memref<1x1xf32, #tpu.memory_space<smem>>
    return
  }
}

</mosaic_0001>

<llo_original>
// kernel: tpu_custom_call.1
$region0: #{tpu_custom_call.1}
  #allocation0 [shape = 'u32[]', space=smem, size = 0x4, offset = 0x4, fixed_abs, tag = 'smem constant byte address 0x4 - core index']
  #allocation1 [shape = 'u32[144,128]{1,0:T(1,128)}', space=vmem, size = 0x12000, scoped, tag = 'internal scratch']
  %s0 = inlined_call_operand.vmem [shape: f32[32,14], index: 0, kind: input, shape index: {}]
  %s1 = inlined_call_operand.vmem [shape: f32[32,32], index: 1, kind: input, shape index: {}]
  %s2 = inlined_call_operand.vmem [shape: f32[32,1], index: 2, kind: input, shape index: {}]
  %s3 = inlined_call_operand.vmem [shape: f32[14,14], index: 3, kind: input, shape index: {}]
  %s4 = inlined_call_operand.vmem [shape: f32[1,14], index: 4, kind: input, shape index: {}]
  %s5 = inlined_call_operand.vmem [shape: f32[1,14], index: 5, kind: input, shape index: {}]
  %s6 = inlined_call_operand.hbm [shape: f32[1,1], index: 6, kind: output, shape index: {}]
  %s7 = sld [smem:[#allocation0]]
  $region34: #{tpu_custom_call.1} parent=0
    _
  %s9 = ssub.s32 1, %s7
  %s10 = scalar_select 0, %s9, %s7
  $region1: #{tpu_custom_call.1} parent=0
    #allocation2 [shape = 'u8[512]{0}', space=smem, size = 0x200, scoped, tag = 'output window, operand 0, single buffered']
    #allocation3 [shape = 's32[1]{0}', space=sflag, size = 0x4, scoped, tag = 'scoped memory for tpu_custom_call.1']
    %11 = vsyncpa [#allocation3], 0
    // Predicated region
    $region2: #{tpu_custom_call.1} parent=1 // pred_check
      _
    $region3: #{tpu_custom_call.1} parent=1 // pred_check_branch
      %13 = sbr.rel (0) target = $region5
    $region4: #{tpu_custom_call.1} parent=1 // pred_region
      _
    $region5: #{tpu_custom_call.1} parent=1 // pred_fallthru
      _
    // Predicated region
    $region6: #{tpu_custom_call.1} parent=1 // pred_check
      _
    $region7: #{tpu_custom_call.1} parent=1 // pred_check_branch
      %15 = sbr.rel (0) target = $region9
    $region8: #{tpu_custom_call.1} parent=1 // pred_region
      _
    $region9: #{tpu_custom_call.1} parent=1 // pred_fallthru
      _
    // Predicated region
    $region10: #{tpu_custom_call.1} parent=1 // pred_check
      _
    $region11: #{tpu_custom_call.1} parent=1 // pred_check_branch
      %17 = sbr.rel (0) target = $region13
    $region12: #{tpu_custom_call.1} parent=1 // pred_region
      _
    $region13: #{tpu_custom_call.1} parent=1 // pred_fallthru
      _
    // Predicated region
    $region14: #{tpu_custom_call.1} parent=1 // pred_check
      _
    $region15: #{tpu_custom_call.1} parent=1 // pred_check_branch
      %19 = sbr.rel (0) target = $region17
    $region16: #{tpu_custom_call.1} parent=1 // pred_region
      _
    $region17: #{tpu_custom_call.1} parent=1 // pred_fallthru
      _
    // Predicated region
    $region18: #{tpu_custom_call.1} parent=1 // pred_check
      _
    $region19: #{tpu_custom_call.1} parent=1 // pred_check_branch
      %21 = sbr.rel (0) target = $region21
    $region20: #{tpu_custom_call.1} parent=1 // pred_region
      _
    $region21: #{tpu_custom_call.1} parent=1 // pred_fallthru
      _
    // Predicated region
    $region22: #{tpu_custom_call.1} parent=1 // pred_check
      _
    $region23: #{tpu_custom_call.1} parent=1 // pred_check_branch
      %23 = sbr.rel (0) target = $region25
    $region24: #{tpu_custom_call.1} parent=1 // pred_region
      _
    $region25: #{tpu_custom_call.1} parent=1 // pred_fallthru
      _
    %v24 = vld [vmem:[%s1] sm:$0xff]
    %v25 = vld [vmem:[%s1 + $0x8] sm:$0xff]
    %v26 = vld [vmem:[%s1 + $0x10] sm:$0xff]
    %v27 = vld [vmem:[%s1 + $0x18] sm:$0xff]
    %v28 = vld [vmem:[%s0] sm:$0xff]
    %v29 = vld [vmem:[%s0 + $0x8] sm:$0xff]
    %v30 = vld [vmem:[%s0 + $0x10] sm:$0xff]
    %v31 = vld [vmem:[%s0 + $0x18] sm:$0xff]
    %v32 = vld [vmem:[%s2] sm:$0xff]
    %v33 = vld [vmem:[%s2 + $0x8] sm:$0xff]
    %v34 = vld [vmem:[%s2 + $0x10] sm:$0xff]
    %v35 = vld [vmem:[%s2 + $0x18] sm:$0xff]
    %37 = vset.pattern.permute.xlu0 0
    %38 = vperm.xlu0 %37, %v32
    %v39 = vpop.permute.xlu0 %38
    %42 = vset.pattern.permute.xlu0 0
    %43 = vperm.xlu0 %42, %v33
    %v44 = vpop.permute.xlu0 %43
    %47 = vset.pattern.permute.xlu0 0
    %48 = vperm.xlu0 %47, %v34
    %v49 = vpop.permute.xlu0 %48
    %52 = vset.pattern.permute.xlu0 0
    %53 = vperm.xlu0 %52, %v35
    %v54 = vpop.permute.xlu0 %53
    %v56 = vsub.f32 %v28, %v39
    %v57 = vsub.f32 %v29, %v44
    %v58 = vsub.f32 %v30, %v49
    %v59 = vsub.f32 %v31, %v54
    %vm60 = vcmask 261120
    %v62 = vsel %vm60, %v24, 0
    %v65 = vsel %vm60, %v25, 0
    %v68 = vsel %vm60, %v26, 0
    %v71 = vsel %vm60, %v27, 0
    %73 = vmatprep.subr.mxu0 0.0
    %74 = vmatpush1.msra.mxu0 %v56
    %75 = vmatprep.subr.mxu0 0.0
    %76 = vmatpush1.msra.mxu0 %v57
    %77 = vmatprep.subr.mxu0 0.0
    %78 = vmatpush1.msra.mxu0 %v58
    %79 = vmatprep.subr.mxu0 0.0
    %80 = vmatpush1.msra.mxu0 %v59
    %81 = vmatprep.subr.mxu0 0.0
    %82 = vmatpush1.msra.mxu0 0.0
    %83 = vmatprep.subr.mxu0 0.0
    %84 = vmatpush1.msra.mxu0 0.0
    %85 = vmatprep.subr.mxu0 0.0
    %86 = vmatpush1.msra.mxu0 0.0
    %87 = vmatprep.subr.mxu0 0.0
    %88 = vmatpush1.msra.mxu0 0.0
    %89 = vmatprep.subr.mxu0 0.0
    %90 = vmatpush1.msra.mxu0 0.0
    %91 = vmatprep.subr.mxu0 0.0
    %92 = vmatpush1.msra.mxu0 0.0
    %93 = vmatprep.subr.mxu0 0.0
    %94 = vmatpush1.msra.mxu0 0.0
    %95 = vmatprep.subr.mxu0 0.0
    %96 = vmatpush1.msra.mxu0 0.0
    %97 = vmatprep.subr.mxu0 0.0
    %98 = vmatpush1.msra.mxu0 0.0
    %99 = vmatprep.subr.mxu0 0.0
    %100 = vmatpush1.msra.mxu0 0.0
    %101 = vmatprep.subr.mxu0 0.0
    %102 = vmatpush1.msra.mxu0 0.0
    %103 = vmatprep.subr.mxu0 0.0
    %104 = vmatpush1.msra.mxu0 0.0
    %105 = vmatprep.subr.mxu0 0.0
    %106 = vmatpush1.msra.mxu0 0.0
    %107 = vmatprep.subr.mxu0 0.0
    %108 = vmatpush1.msra.mxu0 0.0
    %109 = vmatprep.subr.mxu0 0.0
    %110 = vmatpush1.msra.mxu0 0.0
    %111 = vmatprep.subr.mxu0 0.0
    %112 = vmatpush1.msra.mxu0 0.0
    %113 = vmatprep.subr.mxu0 0.0
    %114 = vmatpush1.msra.mxu0 0.0
    %115 = vmatprep.subr.mxu0 0.0
    %116 = vmatpush1.msra.mxu0 0.0
    %117 = vmatprep.subr.mxu0 0.0
    %118 = vmatpush1.msra.mxu0 0.0
    %119 = vmatprep.subr.mxu0 0.0
    %120 = vmatpush1.msra.mxu0 0.0
    %121 = vmatprep.subr.mxu0 0.0
    %122 = vmatpush1.msra.mxu0 0.0
    %123 = vmatprep.subr.mxu0 0.0
    %124 = vmatpush1.msra.mxu0 0.0
    %125 = vmatprep.subr.mxu0 0.0
    %126 = vmatpush1.msra.mxu0 0.0
    %127 = vmatprep.subr.mxu0 0.0
    %128 = vmatpush1.msra.mxu0 0.0
    %129 = vmatprep.subr.mxu0 0.0
    %130 = vmatpush1.msra.mxu0 0.0
    %131 = vmatprep.subr.mxu0 0.0
    %132 = vmatpush1.msra.mxu0 0.0
    %133 = vmatprep.subr.mxu0 0.0
    %134 = vmatpush1.msra.mxu0 0.0
    %135 = vmatprep.subr.mxu0 0.0
    %136 = vmatpush1.msra.mxu0 0.0
    %137 = vmatprep.mubr.f32.mxu0 0.0
    %138 = vmatmul.mubr.f32.gmra.mrb[0].mxu0 %v62
    %v139 = vpop.f32.mrb[0].mxu0
    %v140 = vadd.f32 0.0, %v139
    %v141 = vpop.f32.mrb[0].mxu0
    %142 = vmatprep.mubr.f32.mxu0 0.0
    %143 = vmatmul.mubr.f32.gmra.mrb[0].mxu0 %v65
    %v144 = vpop.f32.mrb[0].mxu0
    %v145 = vadd.f32 0.0, %v144
    %v146 = vpop.f32.mrb[0].mxu0
    %147 = vmatprep.mubr.f32.mxu0 0.0
    %148 = vmatmul.mubr.f32.gmra.mrb[0].mxu0 %v68
    %v149 = vpop.f32.mrb[0].mxu0
    %v150 = vadd.f32 0.0, %v149
    %v151 = vpop.f32.mrb[0].mxu0
    %152 = vmatprep.mubr.f32.mxu0 0.0
    %153 = vmatmul.mubr.f32.gmra.mrb[0].mxu0 %v71
    %v154 = vpop.f32.mrb[0].mxu0
    %v155 = vadd.f32 0.0, %v154
    %v156 = vpop.f32.mrb[0].mxu0
    %157 = vdwg.mxu0
    %v158 = vmul.f32 %v140, %v140
    %v159 = vmul.f32 %v145, %v145
    %v160 = vmul.f32 %v150, %v150
    %v161 = vmul.f32 %v155, %v155
    %vm162 = vcmask 113664
    %v163 = vsel %vm162, %v158, 0.0
    %v164 = vsel %vm162, %v159, 0.0
    %v165 = vadd.f32 %v163, %v164
    %v166 = vsel %vm162, %v160, 0.0
    %v167 = vadd.f32 %v165, %v166
    %v168 = vsel %vm162, %v161, 0.0
    %v169 = vadd.f32 %v167, %v168
    %v170 = vrot.slane %v169, 4
    %v171 = vadd.f32 %v169, %v170
    %v172 = vrot.slane %v171, 2
    %v173 = vadd.f32 %v171, %v172
    %v174 = vrot.slane %v173, 1
    %v175 = vadd.f32 %v173, %v174
    %v176 = vadd.f32 %v175, 1e-12
    %v177 = vrsqrt.pop %v176
    %v178 = vmul.f32 %v140, %v177
    %v179 = vmul.f32 %v145, %v177
    %v180 = vmul.f32 %v150, %v177
    %v181 = vmul.f32 %v155, %v177
    %v182 = vld [vmem:[%s3] sm:$0xff]
    %v183 = vld [vmem:[%s3 + $0x8] sm:$0x3f]
    %v184 = vld [vmem:[%s4] sm:$0x1]
    %v185 = vld [vmem:[%s5] sm:$0x1]
    %v187 = vsel %vm162, %v178, 0
    %v190 = vsel %vm162, %v179, 0
    %v193 = vsel %vm162, %v180, 0
    %v196 = vsel %vm162, %v181, 0
    %vm198 = vcmask 1045504
    %v200 = vsel %vm198, %v183, 0
    %202 = vmatprep.subr.mxu0 0.0
    %203 = vmatpush1.msra.mxu0 %v182
    %204 = vmatprep.subr.mxu0 0.0
    %205 = vmatpush1.msra.mxu0 %v200
    %206 = vmatprep.subr.mxu0 0.0
    %207 = vmatpush1.msra.mxu0 0.0
    %208 = vmatprep.subr.mxu0 0.0
    %209 = vmatpush1.msra.mxu0 0.0
    %210 = vmatprep.subr.mxu0 0.0
    %211 = vmatpush1.msra.mxu0 0.0
    %212 = vmatprep.subr.mxu0 0.0
    %213 = vmatpush1.msra.mxu0 0.0
    %214 = vmatprep.subr.mxu0 0.0
    %215 = vmatpush1.msra.mxu0 0.0
    %216 = vmatprep.subr.mxu0 0.0
    %217 = vmatpush1.msra.mxu0 0.0
    %218 = vmatprep.subr.mxu0 0.0
    %219 = vmatpush1.msra.mxu0 0.0
    %220 = vmatprep.subr.mxu0 0.0
    %221 = vmatpush1.msra.mxu0 0.0
    %222 = vmatprep.subr.mxu0 0.0
    %223 = vmatpush1.msra.mxu0 0.0
    %224 = vmatprep.subr.mxu0 0.0
    %225 = vmatpush1.msra.mxu0 0.0
    %226 = vmatprep.subr.mxu0 0.0
    %227 = vmatpush1.msra.mxu0 0.0
    %228 = vmatprep.subr.mxu0 0.0
    %229 = vmatpush1.msra.mxu0 0.0
    %230 = vmatprep.subr.mxu0 0.0
    %231 = vmatpush1.msra.mxu0 0.0
    %232 = vmatprep.subr.mxu0 0.0
    %233 = vmatpush1.msra.mxu0 0.0
    %234 = vmatprep.subr.mxu0 0.0
    %235 = vmatpush1.msra.mxu0 0.0
    %236 = vmatprep.subr.mxu0 0.0
    %237 = vmatpush1.msra.mxu0 0.0
    %238 = vmatprep.subr.mxu0 0.0
    %239 = vmatpush1.msra.mxu0 0.0
    %240 = vmatprep.subr.mxu0 0.0
    %241 = vmatpush1.msra.mxu0 0.0
    %242 = vmatprep.subr.mxu0 0.0
    %243 = vmatpush1.msra.mxu0 0.0
    %244 = vmatprep.subr.mxu0 0.0
    %245 = vmatpush1.msra.mxu0 0.0
    %246 = vmatprep.subr.mxu0 0.0
    %247 = vmatpush1.msra.mxu0 0.0
    %248 = vmatprep.subr.mxu0 0.0
    %249 = vmatpush1.msra.mxu0 0.0
    %250 = vmatprep.subr.mxu0 0.0
    %251 = vmatpush1.msra.mxu0 0.0
    %252 = vmatprep.subr.mxu0 0.0
    %253 = vmatpush1.msra.mxu0 0.0
    %254 = vmatprep.subr.mxu0 0.0
    %255 = vmatpush1.msra.mxu0 0.0
    %256 = vmatprep.subr.mxu0 0.0
    %257 = vmatpush1.msra.mxu0 0.0
    %258 = vmatprep.subr.mxu0 0.0
    %259 = vmatpush1.msra.mxu0 0.0
    %260 = vmatprep.subr.mxu0 0.0
    %261 = vmatpush1.msra.mxu0 0.0
    %262 = vmatprep.subr.mxu0 0.0
    %263 = vmatpush1.msra.mxu0 0.0
    %264 = vmatprep.subr.mxu0 0.0
    %265 = vmatpush1.msra.mxu0 0.0
    %266 = vmatprep.mubr.f32.mxu0 0.0
    %267 = vmatmul.mubr.f32.gmra.mrb[0].mxu0 %v187
    %v268 = vpop.f32.mrb[0].mxu0
    %v269 = vadd.f32 0.0, %v268
    %v270 = vpop.f32.mrb[0].mxu0
    %271 = vmatprep.mubr.f32.mxu0 0.0
    %272 = vmatmul.mubr.f32.gmra.mrb[0].mxu0 %v190
    %v273 = vpop.f32.mrb[0].mxu0
    %v274 = vadd.f32 0.0, %v273
    %v275 = vpop.f32.mrb[0].mxu0
    %276 = vmatprep.mubr.f32.mxu0 0.0
    %277 = vmatmul.mubr.f32.gmra.mrb[0].mxu0 %v193
    %v278 = vpop.f32.mrb[0].mxu0
    %v279 = vadd.f32 0.0, %v278
    %v280 = vpop.f32.mrb[0].mxu0
    %281 = vmatprep.mubr.f32.mxu0 0.0
    %282 = vmatmul.mubr.f32.gmra.mrb[0].mxu0 %v196
    %v283 = vpop.f32.mrb[0].mxu0
    %v284 = vadd.f32 0.0, %v283
    %v285 = vpop.f32.mrb[0].mxu0
    %286 = vdwg.mxu0
    %v287 = vsub.f32 %v269, %v178
    %v288 = vsub.f32 %v274, %v179
    %v289 = vsub.f32 %v279, %v180
    %v290 = vsub.f32 %v284, %v181
    %v291 = vadd.f32 %v287, 1e-06
    %v292 = vadd.f32 %v288, 1e-06
    %v293 = vadd.f32 %v289, 1e-06
    %v294 = vadd.f32 %v290, 1e-06
    %v295 = vmul.f32 %v291, %v291
    %v296 = vmul.f32 %v292, %v292
    %v297 = vmul.f32 %v293, %v293
    %v298 = vmul.f32 %v294, %v294
    %v299 = vsel %vm162, %v295, 0.0
    %v300 = vsel %vm162, %v296, 0.0
    %v301 = vadd.f32 %v299, %v300
    %v302 = vsel %vm162, %v297, 0.0
    %v303 = vadd.f32 %v301, %v302
    %v304 = vsel %vm162, %v298, 0.0
    %v305 = vadd.f32 %v303, %v304
    %v306 = vrot.slane %v305, 4
    %v307 = vadd.f32 %v305, %v306
    %v308 = vrot.slane %v307, 2
    %v309 = vadd.f32 %v307, %v308
    %v310 = vrot.slane %v309, 1
    %v311 = vadd.f32 %v309, %v310
    %v312 = vrsqrt.pop %v311
    %v313 = vmul.f32 %v311, %v312
    %vm314 = vcmp.eq.f32.partialorder %v311, inf
    %v315 = vsel %vm314, %v311, %v313
    %vm316 = vcmp.eq.f32.partialorder %v311, 0.0
    %v317 = vand.u32 %v311, 2147483648
    %v318 = vsel %vm316, %v317, %v315
    %v319 = vmul.f32 %v184, %v318
    %v320 = vmul.f32 %v319, 1.442695
    %v321 = vpow.pop %v320
    %v322 = vmul.f32 %v185, %v321
    %vm323 = vcmask 106496
    %v324 = vsel %vm323, %v322, 0.0
    %325 = vadd.xlane.f32.xlu0 %v324
    %v326 = vpop.xlane.xlu0 %325
    %v327 = vrot.slane %v326, 4
    %v328 = vadd.f32 %v326, %v327
    %v329 = vrot.slane %v328, 2
    %v330 = vadd.f32 %v328, %v329
    %v331 = vrot.slane %v330, 1
    %v332 = vadd.f32 %v330, %v331
    %s333 = vtos %v332
    %s334 = scalar_lea.smem [#allocation2], 0
    %335 = sst [smem:[%s334]] %s333
    // Predicated region
    $region26: #{tpu_custom_call.1} parent=1 // pred_check
      _
    $region27: #{tpu_custom_call.1} parent=1 // pred_check_branch
      %337 = sbr.rel (0) target = $region29
    $region28: #{tpu_custom_call.1} parent=1 // pred_region
      %s339 = ssub.s32 16, 16
      %340 = vsyncadd [#allocation3], %s339
      %343 = dma.smem_to_hbm [#allocation2], 16, %s6, [#allocation3]
    $region29: #{tpu_custom_call.1} parent=1 // pred_fallthru
      _
    // Predicated region
    $region30: #{tpu_custom_call.1} parent=1 // pred_check
      _
    $region31: #{tpu_custom_call.1} parent=1 // pred_check_branch
      %345 = sbr.rel (0) target = $region33
    $region32: #{tpu_custom_call.1} parent=1 // pred_region
      %346 = dma.done [#allocation3], 16
    $region33: #{tpu_custom_call.1} parent=1 // pred_fallthru
      _
    %347 = sfence
    %348 = vsyncpa [#allocation3], 1

</llo_original>
